<compile_context>
chip_gen: v7x
topology: tpu7x:2x2x1
jax: 0.10.0
libtpu: 0.0.40
codegen_flags: <defaults>
</compile_context>

<pallas_src>
import functools

import jax
import jax.numpy as jnp
from jax.experimental import pallas as pl
from jax.experimental.pallas import tpu as pltpu

LANES = 128
DEFAULT_BLOCK_ROWS = 8192  # 8192 x 128 x 4 B = 4 MiB per input block


def _disc_loss_kernel(fake_ref, real_ref, out_ref, acc_ref, *,
                      bpc, blocks_total, blk, rem_elems):
    c = pl.program_id(0)          # core/parallel index (2)
    i = pl.program_id(1)          # block index within this core's range
    gblk = c * bpc + i            # global block index (may be a phantom block)

    @pl.when(i == 0)
    def _init():
        acc_ref[...] = jnp.zeros_like(acc_ref)

    f = fake_ref[...].astype(jnp.float32)
    r = real_ref[...].astype(jnp.float32)

    # softplus(f) + softplus(-r), with the two logs fused into a single log:
    #   max(f,0) + max(-r,0) + log((1 + exp(-|f|)) * (1 + exp(-|r|)))
    lin = jnp.maximum(f, 0.0) + jnp.maximum(-r, 0.0)
    prod = (1.0 + jnp.exp(-jnp.abs(f))) * (1.0 + jnp.exp(-jnp.abs(r)))
    contrib = lin + jnp.log(prod)

    def fold(x):
        # Fold the (blk,128) block into the (8,128) accumulator with pure VPU
        # adds (vreg-aligned reshape; no cross-lane work in the hot loop).
        return x.reshape(blk // 8, 8, LANES).sum(axis=0)

    full = blk * LANES
    has_phantom = (2 * bpc != blocks_total)   # static: odd block count -> one dummy block

    if rem_elems == full:
        # Every real block is completely valid: no masking anywhere.
        if has_phantom:
            @pl.when(gblk < blocks_total)
            def _acc():
                acc_ref[...] += fold(contrib)
        else:
            acc_ref[...] += fold(contrib)
    else:
        # Steady state: unmasked accumulate for all full blocks.
        @pl.when(gblk < blocks_total - 1)
        def _acc_full():
            acc_ref[...] += fold(contrib)

        # Only the final real block pays for the mask (covers lane pad, row pad
        # and the partial trailing grid block).  Block-local index < ~1M, so
        # int32 iota arithmetic cannot overflow regardless of total N.
        @pl.when(gblk == blocks_total - 1)
        def _acc_masked():
            row = jax.lax.broadcasted_iota(jnp.int32, contrib.shape, 0)
            lane = jax.lax.broadcasted_iota(jnp.int32, contrib.shape, 1)
            local = row * LANES + lane
            acc_ref[...] += fold(jnp.where(local < rem_elems, contrib, 0.0))

    @pl.when(i == bpc - 1)
    def _finalize():
        # Lane-dense (8,128) store of this core's partial sums.
        out_ref[0, :, :] = acc_ref[...]


def discriminator_loss(fake_pred, real_pred, *, block_rows=DEFAULT_BLOCK_ROWS):
    """(BCEWithLogits(fake, 0) + BCEWithLogits(real, 1)) / 2 via a Pallas TPU kernel."""
    assert fake_pred.shape == real_pred.shape, "fake/real predictions must match"
    assert block_rows > 0 and block_rows % 8 == 0
    if jnp.dtype(fake_pred.dtype).itemsize < 4 or jnp.dtype(real_pred.dtype).itemsize < 4:
        # Sub-32-bit inputs pack two rows per sublane: need 16-row granularity.
        assert block_rows % 16 == 0
    n = fake_pred.size
    assert n > 0

    fake_flat = jnp.ravel(fake_pred)
    real_flat = jnp.ravel(real_pred)

    # Lane alignment.  Small arrays (single block) are padded to a multiple of
    # 8*128 so the (8,128) vreg fold always applies; large arrays only pad to
    # 128 (blk == block_rows is already a multiple of 8).  Pad contents are
    # irrelevant: they fall in the final block and are masked there.
    rows_min = pl.cdiv(n, LANES)
    align = LANES if rows_min >= block_rows else 8 * LANES
    pad = (-n) % align
    if pad:
        # TODO(synk): for huge unaligned N this pad is a full-array copy; a
        # tail-only masked DMA would avoid it.
        fake_flat = jnp.pad(fake_flat, (0, pad))
        real_flat = jnp.pad(real_flat, (0, pad))
    rows = fake_flat.size // LANES
    fake2d = fake_flat.reshape(rows, LANES)
    real2d = real_flat.reshape(rows, LANES)

    blk = block_rows if rows > block_rows else rows      # always a multiple of 8
    blocks_total = pl.cdiv(rows, blk)
    bpc = pl.cdiv(blocks_total, 2)                       # blocks per core
    # Valid (non-pad) elements in the final real block; static Python int.
    rem_elems = n - (blocks_total - 1) * blk * LANES

    if 2 * bpc != blocks_total:
        # Odd block count: core 1's last block is a phantom — clamp its DMA to
        # the last real block (its contribution is skipped in-kernel).
        def in_map(c, i):
            return (jnp.minimum(c * bpc + i, blocks_total - 1), 0)
    else:
        def in_map(c, i):
            return (c * bpc + i, 0)

    kernel = functools.partial(
        _disc_loss_kernel,
        bpc=bpc, blocks_total=blocks_total, blk=blk, rem_elems=rem_elems)

    out = pl.pallas_call(
        kernel,
        out_shape=jax.ShapeDtypeStruct((2, 8, LANES), jnp.float32),
        grid_spec=pltpu.PrefetchScalarGridSpec(
            num_scalar_prefetch=0,
            grid=(2, bpc),
            in_specs=[
                pl.BlockSpec((blk, LANES), in_map),
                pl.BlockSpec((blk, LANES), in_map),
            ],
            out_specs=pl.BlockSpec((1, 8, LANES), lambda c, i: (c, 0, 0)),
            scratch_shapes=[pltpu.VMEM((8, LANES), jnp.float32)],
        ),
        compiler_params=pltpu.CompilerParams(
            # Leading axis shards across TensorCores on multi-core chips (v7x);
            # block axis is a sequential accumulation.
            dimension_semantics=("parallel", "arbitrary"),
            # 16 MiB of double-buffered input blocks + scratch; raise the limit
            # so the 8192-row blocks also compile on v5e's 16 MiB default.
            vmem_limit_bytes=32 << 20,
        ),
    )(fake2d, real2d)

    # Tiny (2,8,128) combine + scale in the wrapper.
    return jnp.sum(out) / (2.0 * n)


def _reference_loss(fake_pred, real_pred):
    fake_loss = jnp.mean(jax.nn.softplus(fake_pred))
    real_loss = jnp.mean(jax.nn.softplus(-real_pred))
    return (fake_loss + real_loss) / 2.0


if __name__ == "__main__":
    key = jax.random.PRNGKey(0)

    cases = [
        # (shape, block_rows override or None, dtype)
        ((2, 4, 16, 16), None, jnp.float32),   # aligned, single block, unmasked fold path
        ((3, 1, 13, 17), None, jnp.float32),   # 663 elems: pad + final-block mask
        ((2, 5, 16, 16), 8, jnp.float32),      # multi-block grid, partial last block + phantom
        ((4, 6, 16, 16), 16, jnp.float32),     # aligned multi-block, odd block count (phantom)
        ((2, 4, 16, 16), None, jnp.bfloat16),  # bf16 pass-through, f32 in-kernel accumulate
    ]

    for idx, (shape, blk, dtype) in enumerate(cases):
        k1, k2 = jax.random.split(jax.random.fold_in(key, idx))
        fake = (jax.random.normal(k1, shape, dtype=jnp.float32) * 3.0).astype(dtype)
        real = (jax.random.normal(k2, shape, dtype=jnp.float32) * 3.0).astype(dtype)

        kwargs = {} if blk is None else {"block_rows": blk}
        loss = discriminator_loss(fake, real, **kwargs)
        loss = jax.block_until_ready(loss)

        ref = _reference_loss(fake.astype(jnp.float32), real.astype(jnp.float32))
        assert jnp.allclose(loss, ref, rtol=1e-5, atol=1e-6), (shape, dtype, loss, ref)

    print("KERNEL_OK")
</pallas_src>

<mosaic_0001>
module attributes {stable_mosaic.version = 11 : i64} {
  func.func @_disc_loss_kernel(%arg0: i32, %arg1: i32, %arg2: memref<16x128xf32, #tpu.memory_space<vmem>>, %arg3: memref<16x128xf32, #tpu.memory_space<vmem>>, %arg4: memref<1x8x128xf32, #tpu.memory_space<vmem>>, %arg5: memref<8x128xf32, #tpu.memory_space<vmem>>) attributes {dimension_semantics = [#tpu.dimension_semantics<parallel>, #tpu.dimension_semantics<arbitrary>], iteration_bounds = array<i64: 2, 1>, scalar_prefetch = 0 : i64, scratch_operands = 1 : i64, tpu.core_type = #tpu.core_type<tc>, window_params = [{transform_indices = @transform_0, window_bounds = array<i64: 16, 128>}, {transform_indices = @transform_1, window_bounds = array<i64: 16, 128>}, {transform_indices = @transform_2, window_bounds = array<i64: 1, 8, 128>}]} {
    %c1_i32 = arith.constant 1 : i32
    %0 = arith.muli %arg0, %c1_i32 : i32
    %1 = arith.addi %0, %arg1 : i32
    %c0_i32 = arith.constant 0 : i32
    %2 = arith.cmpi eq, %arg1, %c0_i32 : i32
    %3 = arith.extui %2 : i1 to i32
    %c0_i32_0 = arith.constant 0 : i32
    %4 = arith.cmpi ne, %3, %c0_i32_0 : i32
    scf.if %4 {
      %cst_14 = arith.constant 0.000000e+00 : f32
      %35 = vector.broadcast %cst_14 : f32 to vector<8x128xf32>
      %c0_15 = arith.constant 0 : index
      %c0_16 = arith.constant 0 : index
      %36 = vector.load %arg5[%c0_15, %c0_16] : memref<8x128xf32, #tpu.memory_space<vmem>>, vector<8x128xf32>
      tpu.vector_store %arg5[%c0_15, %c0_16], %35 {strides = array<i32>} : memref<8x128xf32, #tpu.memory_space<vmem>>, vector<8x128xf32>,
    } else {
    }
    %c0 = arith.constant 0 : index
    %c0_1 = arith.constant 0 : index
    %5 = vector.load %arg2[%c0, %c0_1] : memref<16x128xf32, #tpu.memory_space<vmem>>, vector<16x128xf32>
    %c0_2 = arith.constant 0 : index
    %c0_3 = arith.constant 0 : index
    %6 = vector.load %arg3[%c0_2, %c0_3] : memref<16x128xf32, #tpu.memory_space<vmem>>, vector<16x128xf32>
    %cst = arith.constant 0.000000e+00 : f32
    %7 = vector.broadcast %cst : f32 to vector<16x128xf32>
    %8 = arith.maximumf %5, %7 : vector<16x128xf32>
    %cst_4 = arith.constant 0.000000e+00 : f32
    %9 = vector.broadcast %cst_4 : f32 to vector<16x128xf32>
    %10 = arith.subf %9, %6 : vector<16x128xf32>
    %cst_5 = arith.constant 0.000000e+00 : f32
    %11 = vector.broadcast %cst_5 : f32 to vector<16x128xf32>
    %12 = arith.maximumf %10, %11 : vector<16x128xf32>
    %13 = arith.addf %8, %12 : vector<16x128xf32>
    %14 = math.absf %5 : vector<16x128xf32>
    %cst_6 = arith.constant 0.000000e+00 : f32
    %15 = vector.broadcast %cst_6 : f32 to vector<16x128xf32>
    %16 = arith.subf %15, %14 : vector<16x128xf32>
    %17 = math.exp %16 : vector<16x128xf32>
    %cst_7 = arith.constant 1.000000e+00 : f32
    %18 = vector.broadcast %cst_7 : f32 to vector<16x128xf32>
    %19 = arith.addf %18, %17 : vector<16x128xf32>
    %20 = math.absf %6 : vector<16x128xf32>
    %cst_8 = arith.constant 0.000000e+00 : f32
    %21 = vector.broadcast %cst_8 : f32 to vector<16x128xf32>
    %22 = arith.subf %21, %20 : vector<16x128xf32>
    %23 = math.exp %22 : vector<16x128xf32>
    %cst_9 = arith.constant 1.000000e+00 : f32
    %24 = vector.broadcast %cst_9 : f32 to vector<16x128xf32>
    %25 = arith.addf %24, %23 : vector<16x128xf32>
    %26 = arith.mulf %19, %25 : vector<16x128xf32>
    %27 = math.log %26 : vector<16x128xf32>
    %28 = arith.addf %13, %27 : vector<16x128xf32>
    %c1_i32_10 = arith.constant 1 : i32
    %29 = arith.cmpi slt, %1, %c1_i32_10 : i32
    %30 = arith.extui %29 : i1 to i32
    %c0_i32_11 = arith.constant 0 : i32
    %31 = arith.cmpi ne, %30, %c0_i32_11 : i32
    scf.if %31 {
      %c0_14 = arith.constant 0 : index
      %c0_15 = arith.constant 0 : index
      %35 = vector.load %arg5[%c0_14, %c0_15] : memref<8x128xf32, #tpu.memory_space<vmem>>, vector<8x128xf32>
      %36 = vector.shape_cast %28 : vector<16x128xf32> to vector<2x8x128xf32>
      %cst_16 = arith.constant dense<0.000000e+00> : vector<8x128xf32>
      %37 = vector.multi_reduction <add>, %36, %cst_16 [0] : vector<2x8x128xf32> to vector<8x128xf32>
      %38 = arith.addf %35, %37 : vector<8x128xf32>
      %c0_17 = arith.constant 0 : index
      %c0_18 = arith.constant 0 : index
      %39 = vector.load %arg5[%c0_17, %c0_18] : memref<8x128xf32, #tpu.memory_space<vmem>>, vector<8x128xf32>
      tpu.vector_store %arg5[%c0_17, %c0_18], %38 {strides = array<i32>} : memref<8x128xf32, #tpu.memory_space<vmem>>, vector<8x128xf32>,
    } else {
    }
    %c0_i32_12 = arith.constant 0 : i32
    %32 = arith.cmpi eq, %arg1, %c0_i32_12 : i32
    %33 = arith.extui %32 : i1 to i32
    %c0_i32_13 = arith.constant 0 : i32
    %34 = arith.cmpi ne, %33, %c0_i32_13 : i32
    scf.if %34 {
      %c0_14 = arith.constant 0 : index
      %c0_15 = arith.constant 0 : index
      %35 = vector.load %arg5[%c0_14, %c0_15] : memref<8x128xf32, #tpu.memory_space<vmem>>, vector<8x128xf32>
      %c0_16 = arith.constant 0 : index
      %c0_17 = arith.constant 0 : index
      %c0_18 = arith.constant 0 : index
      %36 = vector.load %arg4[%c0_16, %c0_17, %c0_18] : memref<1x8x128xf32, #tpu.memory_space<vmem>>, vector<1x8x128xf32>
      %37 = vector.shape_cast %36 : vector<1x8x128xf32> to vector<8x128xf32>
      %38 = vector.shape_cast %35 : vector<8x128xf32> to vector<1x8x128xf32>
      tpu.vector_store %arg4[%c0_16, %c0_17, %c0_18], %38 {strides = array<i32>} : memref<1x8x128xf32, #tpu.memory_space<vmem>>, vector<1x8x128xf32>,
    } else {
    }
    return
  }
  func.func @transform_0(%arg0: i32, %arg1: i32) -> (i32, i32) {
    %c1_i32 = arith.constant 1 : i32
    %0 = arith.muli %arg0, %c1_i32 : i32
    %1 = arith.addi %0, %arg1 : i32
    %c0_i32 = arith.constant 0 : i32
    %2 = arith.minsi %1, %c0_i32 : i32
    %c0_i32_0 = arith.constant 0 : i32
    %c0_i32_1 = arith.constant 0 : i32
    return %2, %c0_i32_0 : i32, i32
  }
  func.func @transform_1(%arg0: i32, %arg1: i32) -> (i32, i32) {
    %c1_i32 = arith.constant 1 : i32
    %0 = arith.muli %arg0, %c1_i32 : i32
    %1 = arith.addi %0, %arg1 : i32
    %c0_i32 = arith.constant 0 : i32
    %2 = arith.minsi %1, %c0_i32 : i32
    %c0_i32_0 = arith.constant 0 : i32
    %c0_i32_1 = arith.constant 0 : i32
    return %2, %c0_i32_0 : i32, i32
  }
  func.func @transform_2(%arg0: i32, %arg1: i32) -> (i32, i32, i32) {
    %c0_i32 = arith.constant 0 : i32
    %c0_i32_0 = arith.constant 0 : i32
    %c0_i32_1 = arith.constant 0 : i32
    return %arg0, %c0_i32, %c0_i32_0 : i32, i32, i32
  }
}

</mosaic_0001>

<llo_original>
// kernel: tpu_custom_call.1
$region0: #{tpu_custom_call.1}
  #allocation0 [shape = 'u32[]', space=smem, size = 0x4, offset = 0x4, fixed_abs, tag = 'smem constant byte address 0x4 - core index']
  #allocation1 [shape = 'u32[144,128]{1,0:T(1,128)}', space=vmem, size = 0x12000, scoped, tag = 'internal scratch']
  #allocation2 [shape = 'f32[8,128]{1,0:T(8,128)}', space=vmem, size = 0x1000, scoped, tag = 'scratch operand']
  %s0 = inlined_call_operand.hbm [shape: f32[16,128], index: 0, kind: input, shape index: {}]
  %s1 = inlined_call_operand.hbm [shape: f32[16,128], index: 1, kind: input, shape index: {}]
  %s2 = inlined_call_operand.hbm [shape: f32[2,8,128], index: 2, kind: output, shape index: {}]
  %s3 = sld [smem:[#allocation0]]
  $region61: #{tpu_custom_call.1} parent=0
    _
  %s5 = ssub.s32 1, %s3
  %s6 = scalar_select 0, %s5, %s3
  $region1: #{tpu_custom_call.1} parent=0
    #allocation3 [shape = 'u8[16384]{0}', space=vmem, size = 0x4000, scoped, tag = 'input window, operand 0']
    #allocation4 [shape = 's32[2]{0}', space=sflag, size = 0x8, scoped, tag = 'scoped memory for tpu_custom_call.1']
    #allocation5 [shape = 's32[2]{0}', space=sflag, size = 0x8, scoped, tag = 'scoped memory for tpu_custom_call.1']
    #allocation6 [shape = 'u8[16384]{0}', space=vmem, size = 0x4000, scoped, tag = 'input window, operand 1']
    #allocation7 [shape = 's32[2]{0}', space=sflag, size = 0x8, scoped, tag = 'scoped memory for tpu_custom_call.1']
    #allocation8 [shape = 'u8[8192]{0}', space=vmem, size = 0x2000, scoped, tag = 'output window, operand 0']
    %7 = vsyncpa [#allocation4], 0
    %s8 = scalar_lea.sflag [#allocation4], 1
    %9 = vsyncpa %s8, 0
    %10 = vsyncpa [#allocation7], 0
    %s11 = scalar_lea.sflag [#allocation7], 1
    %12 = vsyncpa %s11, 0
    %13 = vsyncpa [#allocation5], 0
    %s14 = scalar_lea.sflag [#allocation5], 1
    %15 = vsyncpa %s14, 0
    loop: start=0, step=1, limit=4
    $region2: #{tpu_custom_call.1} parent=1 // loop_pre_header
      _
    $region3: #{tpu_custom_call.1} parent=1 // loop_header
      %s17 = sphi 0, %s21
      %p18 = scmp.ge.s32.totalorder %s17, 4
      %s24 = sphi 0, %s36
      %s25 = sphi 0, %s32
      %s26 = sphi 0, %s24
      %s27 = sphi 0, %s25
      %s28 = sphi 0, %s26
      %s29 = sphi 0, %s27
      %s45 = sphi 0, %s47
      %s48 = sphi 0, %s45
      %s49 = sphi 0, %s48
      %s65 = sphi 0, %s49
      %s77 = sphi 0, %s79
      %s80 = sphi 0, %s77
      %s81 = sphi 0, %s80
      %s97 = sphi 0, %s81
      %s103 = sphi 0, %s105
      %s106 = sphi 0, %s103
      %s107 = sphi 0, %s106
      %s123 = sphi 0, %s107
    $region4: #{tpu_custom_call.1} parent=1 // loop_header_branch
      %20 = sbr.rel (%p18) target = $region8
    $region5: #{tpu_custom_call.1} parent=1 // loop_body
      %s22 = ssub.s32 %s17, 1
      %s23 = ssub.s32 %s17, 2
      %s30 = sadd.s32 1, %s25
      %p31 = scmp.ge.s32.totalorder %s30, 1
      %s32 = scalar_select %p31, 0, %s30
      %s33 = sadd.s32 1, %s24
      %s34 = scalar_select %p31, %s33, %s24
      %p35 = scmp.ge.s32.totalorder %s34, 2
      %s36 = scalar_select %p35, 0, %s34
      %s37 = sadd.s32 %s24, %s25
      %p38 = scmp.lt.s32.totalorder %s37, 0
      %s39 = scalar_select %p38, %s37, 0
      %s40 = sadd.s32 %s36, %s32
      %p41 = scmp.lt.s32.totalorder %s40, 0
      %s42 = scalar_select %p41, %s40, 0
      %s43 = ssub.s32 %s39, %s42
      %p44 = scmp.eq.s32.totalorder %s43, 0
      %s46 = sadd.s32 %s45, 1
      %s47 = scalar_select %p44, %s45, %s46
      %p50 = pneg %p44
      %p51 = scmp.eq.s32.totalorder %s17, 1
      %p52 = por %p50, %p51
      %p53 = scmp.ne.s32.totalorder %s45, %s48
      %p54 = scmp.eq.s32.totalorder %s17, 0
      %p55 = por %p53, %p54
      %p56 = scmp.ne.s32.totalorder %s45, %s48
      %p57 = scmp.eq.s32.totalorder %s22, 1
      %p58 = por %p56, %p57
      %p59 = scmp.ne.s32.totalorder %s48, %s49
      %p60 = scmp.eq.s32.totalorder %s22, 0
      %p61 = por %p59, %p60
      %p62 = scmp.ne.s32.totalorder %s48, %s49
      %p63 = scmp.eq.s32.totalorder %s23, 1
      %p64 = por %p62, %p63
      %p66 = scmp.ne.s32.totalorder %s49, %s65
      %p67 = scmp.eq.s32.totalorder %s23, 0
      %p68 = por %p66, %p67
      %s69 = sadd.s32 %s24, %s25
      %p70 = scmp.lt.s32.totalorder %s69, 0
      %s71 = scalar_select %p70, %s69, 0
      %s72 = sadd.s32 %s36, %s32
      %p73 = scmp.lt.s32.totalorder %s72, 0
      %s74 = scalar_select %p73, %s72, 0
      %s75 = ssub.s32 %s71, %s74
      %p76 = scmp.eq.s32.totalorder %s75, 0
      %s78 = sadd.s32 %s77, 1
      %s79 = scalar_select %p76, %s77, %s78
      %p82 = pneg %p76
      %p83 = scmp.eq.s32.totalorder %s17, 1
      %p84 = por %p82, %p83
      %p85 = scmp.ne.s32.totalorder %s77, %s80
      %p86 = scmp.eq.s32.totalorder %s17, 0
      %p87 = por %p85, %p86
      %p88 = scmp.ne.s32.totalorder %s77, %s80
      %p89 = scmp.eq.s32.totalorder %s22, 1
      %p90 = por %p88, %p89
      %p91 = scmp.ne.s32.totalorder %s80, %s81
      %p92 = scmp.eq.s32.totalorder %s22, 0
      %p93 = por %p91, %p92
      %p94 = scmp.ne.s32.totalorder %s80, %s81
      %p95 = scmp.eq.s32.totalorder %s23, 1
      %p96 = por %p94, %p95
      %p98 = scmp.ne.s32.totalorder %s81, %s97
      %p99 = scmp.eq.s32.totalorder %s23, 0
      %p100 = por %p98, %p99
      %s101 = ssub.s32 %s24, %s36
      %p102 = scmp.eq.s32.totalorder %s101, 0
      %s104 = sadd.s32 %s103, 1
      %s105 = scalar_select %p102, %s103, %s104
      %p108 = pneg %p102
      %p109 = scmp.eq.s32.totalorder %s17, 1
      %p110 = por %p108, %p109
      %p111 = scmp.ne.s32.totalorder %s103, %s106
      %p112 = scmp.eq.s32.totalorder %s17, 0
      %p113 = por %p111, %p112
      %p114 = scmp.ne.s32.totalorder %s103, %s106
      %p115 = scmp.eq.s32.totalorder %s22, 1
      %p116 = por %p114, %p115
      %p117 = scmp.ne.s32.totalorder %s106, %s107
      %p118 = scmp.eq.s32.totalorder %s22, 0
      %p119 = por %p117, %p118
      %p120 = scmp.ne.s32.totalorder %s106, %s107
      %p121 = scmp.eq.s32.totalorder %s23, 1
      %p122 = por %p120, %p121
      %p124 = scmp.ne.s32.totalorder %s107, %s123
      %p125 = scmp.eq.s32.totalorder %s23, 0
      %p126 = por %p124, %p125
      %p127 = scmp.le.s32.totalorder 1, %s17
      %p128 = scmp.lt.s32.totalorder %s17, 3
      %p129 = pnand %p127, %p128
      %p130 = pneg %p129
      // Predicated region
      $region9: #{tpu_custom_call.1} parent=5 // pred_check
        _
      $region10: #{tpu_custom_call.1} parent=5 // pred_check_branch
        %132 = sbr.rel (%p129) target = $region12
      $region11: #{tpu_custom_call.1} parent=5 // pred_region
        %s133 = ssub.s32 %s17, 1
      $region12: #{tpu_custom_call.1} parent=5 // pred_fallthru
        _
      %p134 = scmp.lt.s32.totalorder %s17, 2
      // Predicated region
      $region13: #{tpu_custom_call.1} parent=5 // pred_check
        %p135 = pneg %p134
      $region14: #{tpu_custom_call.1} parent=5 // pred_check_branch
        %137 = sbr.rel (%p135) target = $region16
      $region15: #{tpu_custom_call.1} parent=5 // pred_region
        // Predicated region
        $region17: #{tpu_custom_call.1} parent=15 // pred_check
          %p138 = pneg %p55
        $region18: #{tpu_custom_call.1} parent=15 // pred_check_branch
          %140 = sbr.rel (%p138) target = $region20
        $region19: #{tpu_custom_call.1} parent=15 // pred_region
          %s141 = sand.u32 %s45, 1
          %s142 = scalar_lea.sflag [#allocation4], %s141
          %s143 = sand.u32 %s45, 1
          %s144 = smul.addr %s143, 16
          %s145 = scalar_lea.vmem [#allocation3], %s144
          %s146 = sadd.s32 %s24, %s25
          %p147 = scmp.lt.s32.totalorder %s146, 0
          %s148 = scalar_select %p147, %s146, 0
          %s149 = smul.u32 2, %s148
          %s151 = ssub.s32 256, 256
          %152 = vsyncadd %s142, %s151
          %s153 = smul.addr %s149, 128
          %s154 = scalar_lea.hbm %s0, %s153
          %s155 = sshll.u32 %s145, 4
          %s156 = int_to_ptr.vmem [resolvable:$true] %s155
          %161 = dma.hbm_to_vmem [thread:$0]  %s154, 256, %s156, %s142, 128, 128, 8
        $region20: #{tpu_custom_call.1} parent=15 // pred_fallthru
          _
        // Predicated region
        $region21: #{tpu_custom_call.1} parent=15 // pred_check
          %p162 = pneg %p87
        $region22: #{tpu_custom_call.1} parent=15 // pred_check_branch
          %164 = sbr.rel (%p162) target = $region24
        $region23: #{tpu_custom_call.1} parent=15 // pred_region
          %s165 = sand.u32 %s77, 1
          %s166 = scalar_lea.sflag [#allocation7], %s165
          %s167 = sand.u32 %s77, 1
          %s168 = smul.addr %s167, 16
          %s169 = scalar_lea.vmem [#allocation6], %s168
          %s170 = sadd.s32 %s24, %s25
          %p171 = scmp.lt.s32.totalorder %s170, 0
          %s172 = scalar_select %p171, %s170, 0
          %s173 = smul.u32 2, %s172
          %s175 = ssub.s32 256, 256
          %176 = vsyncadd %s166, %s175
          %s177 = smul.addr %s173, 128
          %s178 = scalar_lea.hbm %s1, %s177
          %s179 = sshll.u32 %s169, 4
          %s180 = int_to_ptr.vmem [resolvable:$true] %s179
          %185 = dma.hbm_to_vmem [thread:$0]  %s178, 256, %s180, %s166, 128, 128, 8
        $region24: #{tpu_custom_call.1} parent=15 // pred_fallthru
          _
      $region16: #{tpu_custom_call.1} parent=5 // pred_fallthru
        _
      %p186 = scmp.le.s32.totalorder 1, %s17
      %p187 = scmp.lt.s32.totalorder %s17, 3
      %p188 = pnand %p186, %p187
      %p189 = pneg %p188
      // Predicated region
      $region25: #{tpu_custom_call.1} parent=5 // pred_check
        _
      $region26: #{tpu_custom_call.1} parent=5 // pred_check_branch
        %191 = sbr.rel (%p188) target = $region28
      $region27: #{tpu_custom_call.1} parent=5 // pred_region
        %s192 = ssub.s32 %s17, 1
        %s193 = sand.u32 %s48, 1
        %s194 = scalar_lea.sflag [#allocation4], %s193
        %s195 = sand.u32 %s48, 1
        %s196 = smul.addr %s195, 16
        %s197 = scalar_lea.vmem [#allocation3], %s196
        // Predicated region
        $region29: #{tpu_custom_call.1} parent=27 // pred_check
          %p198 = pneg %p61
        $region30: #{tpu_custom_call.1} parent=27 // pred_check_branch
          %200 = sbr.rel (%p198) target = $region32
        $region31: #{tpu_custom_call.1} parent=27 // pred_region
          %201 = dma.done %s194, 256
        $region32: #{tpu_custom_call.1} parent=27 // pred_fallthru
          _
        %s202 = sand.u32 %s80, 1
        %s203 = scalar_lea.sflag [#allocation7], %s202
        %s204 = sand.u32 %s80, 1
        %s205 = smul.addr %s204, 16
        %s206 = scalar_lea.vmem [#allocation6], %s205
        // Predicated region
        $region33: #{tpu_custom_call.1} parent=27 // pred_check
          %p207 = pneg %p93
        $region34: #{tpu_custom_call.1} parent=27 // pred_check_branch
          %209 = sbr.rel (%p207) target = $region36
        $region35: #{tpu_custom_call.1} parent=27 // pred_region
          %210 = dma.done %s203, 256
        $region36: #{tpu_custom_call.1} parent=27 // pred_fallthru
          _
        %s211 = sand.u32 %s48, 1
        %s212 = scalar_lea.sflag [#allocation4], %s211
        %s213 = sand.u32 %s48, 1
        %s214 = smul.addr %s213, 16
        %s215 = scalar_lea.vmem [#allocation3], %s214
        %p216 = pneg %p61
        %p217 = pneg %p58
        %s218 = sand.u32 %s80, 1
        %s219 = scalar_lea.sflag [#allocation7], %s218
        %s220 = sand.u32 %s80, 1
        %s221 = smul.addr %s220, 16
        %s222 = scalar_lea.vmem [#allocation6], %s221
        %p223 = pneg %p93
        %p224 = pneg %p90
        %p225 = pneg %p119
        %p226 = pneg %p116
        %s227 = sand.u32 %s106, 1
        %s228 = scalar_lea.sflag [#allocation5], %s227
        %s229 = sand.u32 %s106, 1
        %s230 = smul.addr %s229, 8
        %s231 = scalar_lea.vmem [#allocation8], %s230
        %s232 = sadd.s32 %s26, %s27
        %p233 = scmp.lt.s32.totalorder %s232, 0
        %s234 = scalar_select %p233, %s232, 0
        %s235 = smul.u32 2, %s234
        %s236 = sadd.s32 %s26, %s27
        %p237 = scmp.lt.s32.totalorder %s236, 0
        %s238 = scalar_select %p237, %s236, 0
        %s239 = smul.u32 2, %s238
        %s240 = sadd.s32 %s26, %s27
        %p241 = scmp.eq.s32.totalorder %s27, 0
        // Predicated region
        $region37: #{tpu_custom_call.1} parent=27 // pred_check
          %p242 = pneg %p241
        $region38: #{tpu_custom_call.1} parent=27 // pred_check_branch
          %244 = sbr.rel (%p242) target = $region40
        $region39: #{tpu_custom_call.1} parent=27 // pred_region
          %245 = vst [vmem:[#allocation2] sm:$0xff] 0.0
        $region40: #{tpu_custom_call.1} parent=27 // pred_fallthru
          _
        %v246 = vld [vmem:[%s197] sm:$0xff]
        %v247 = vld [vmem:[%s197 + $0x8] sm:$0xff]
        %v248 = vld [vmem:[%s206] sm:$0xff]
        %v249 = vld [vmem:[%s206 + $0x8] sm:$0xff]
        %v250 = vmax.f32 %v246, 0.0
        %v251 = vmax.f32 %v247, 0.0
        %v252 = vsub.f32 0.0, %v248
        %v253 = vsub.f32 0.0, %v249
        %v254 = vmax.f32 %v252, 0.0
        %v255 = vmax.f32 %v253, 0.0
        %v256 = vadd.f32 %v250, %v254
        %v257 = vadd.f32 %v251, %v255
        %v258 = vand.u32 2147483647, %v246
        %v259 = vand.u32 2147483647, %v247
        %v260 = vsub.f32 0.0, %v258
        %v261 = vsub.f32 0.0, %v259
        %v262 = vmul.f32 %v260, 1.442695
        %v263 = vpow.pop %v262
        %v264 = vmul.f32 %v261, 1.442695
        %v265 = vpow.pop %v264
        %v266 = vadd.f32 %v263, 1.0
        %v267 = vadd.f32 %v265, 1.0
        %v268 = vand.u32 2147483647, %v248
        %v269 = vand.u32 2147483647, %v249
        %v270 = vsub.f32 0.0, %v268
        %v271 = vsub.f32 0.0, %v269
        %v272 = vmul.f32 %v270, 1.442695
        %v273 = vpow.pop %v272
        %v274 = vmul.f32 %v271, 1.442695
        %v275 = vpow.pop %v274
        %v276 = vadd.f32 %v273, 1.0
        %v277 = vadd.f32 %v275, 1.0
        %v278 = vmul.f32 %v266, %v276
        %v279 = vmul.f32 %v267, %v277
        %v280 = vlog2.pop %v278
        %v281 = vmul.f32 %v280, 0.6931472
        %v282 = vlog2.pop %v279
        %v283 = vmul.f32 %v282, 0.6931472
        %v284 = vadd.f32 %v256, %v281
        %v285 = vadd.f32 %v257, %v283
        %p286 = scmp.lt.s32.totalorder %s240, 1
        // Predicated region
        $region41: #{tpu_custom_call.1} parent=27 // pred_check
          %p287 = pneg %p286
        $region42: #{tpu_custom_call.1} parent=27 // pred_check_branch
          %289 = sbr.rel (%p287) target = $region44
        $region43: #{tpu_custom_call.1} parent=27 // pred_region
          %v290 = vld [vmem:[#allocation2] sm:$0xff]
          %v291 = vadd.f32 %v284, %v285
          %v292 = vadd.f32 %v290, %v291
          %293 = vst [vmem:[#allocation2] sm:$0xff] %v292
        $region44: #{tpu_custom_call.1} parent=27 // pred_fallthru
          _
        // Predicated region
        $region45: #{tpu_custom_call.1} parent=27 // pred_check
          %p294 = pneg %p241
        $region46: #{tpu_custom_call.1} parent=27 // pred_check_branch
          %296 = sbr.rel (%p294) target = $region48
        $region47: #{tpu_custom_call.1} parent=27 // pred_region
          %v297 = vld [vmem:[#allocation2] sm:$0xff]
          %298 = vst [vmem:[%s231] sm:$0xff] %v297
        $region48: #{tpu_custom_call.1} parent=27 // pred_fallthru
          _
        %s299 = sand.u32 %s106, 1
        %s300 = scalar_lea.sflag [#allocation5], %s299
        %s301 = sand.u32 %s106, 1
        %s302 = smul.addr %s301, 8
        %s303 = scalar_lea.vmem [#allocation8], %s302
        // Predicated region
        $region49: #{tpu_custom_call.1} parent=27 // pred_check
          %p304 = pneg %p116
        $region50: #{tpu_custom_call.1} parent=27 // pred_check_branch
          %306 = sbr.rel (%p304) target = $region52
        $region51: #{tpu_custom_call.1} parent=27 // pred_region
          %s308 = ssub.s32 128, 128
          %309 = vsyncadd %s300, %s308
          %s310 = smul.addr %s26, 128
          %s311 = scalar_lea.hbm %s2, %s310
          %s313 = sshll.u32 %s303, 4
          %s314 = int_to_ptr.vmem [resolvable:$true] %s313
          %316 = dma.vmem_to_hbm [thread:$0]  %s314, 128, %s311, %s300
        $region52: #{tpu_custom_call.1} parent=27 // pred_fallthru
          _
      $region28: #{tpu_custom_call.1} parent=5 // pred_fallthru
        _
      %p317 = scmp.le.s32.totalorder 2, %s17
      // Predicated region
      $region53: #{tpu_custom_call.1} parent=5 // pred_check
        %p318 = pneg %p317
      $region54: #{tpu_custom_call.1} parent=5 // pred_check_branch
        %320 = sbr.rel (%p318) target = $region56
      $region55: #{tpu_custom_call.1} parent=5 // pred_region
        %s321 = ssub.s32 %s17, 2
        // Predicated region
        $region57: #{tpu_custom_call.1} parent=55 // pred_check
          %p322 = pneg %p122
        $region58: #{tpu_custom_call.1} parent=55 // pred_check_branch
          %324 = sbr.rel (%p322) target = $region60
        $region59: #{tpu_custom_call.1} parent=55 // pred_region
          %s325 = sand.u32 %s107, 1
          %s326 = scalar_lea.sflag [#allocation5], %s325
          %s327 = sand.u32 %s107, 1
          %s328 = smul.addr %s327, 8
          %s329 = scalar_lea.vmem [#allocation8], %s328
          %330 = dma.done %s326, 128
        $region60: #{tpu_custom_call.1} parent=55 // pred_fallthru
          _
      $region56: #{tpu_custom_call.1} parent=5 // pred_fallthru
        _
    $region6: #{tpu_custom_call.1} parent=1 // loop_footer
      %s21 = sadd.s32 1, %s17
    $region7: #{tpu_custom_call.1} parent=1 // loop_footer_branch
      %16 = sbr.rel target = $region3
    $region8: #{tpu_custom_call.1} parent=1 // loop_exit
      _
    %331 = vsyncpa [#allocation4], 1
    %s332 = scalar_lea.sflag [#allocation4], 1
    %333 = vsyncpa %s332, 1
    %334 = vsyncpa [#allocation7], 1
    %s335 = scalar_lea.sflag [#allocation7], 1
    %336 = vsyncpa %s335, 1
    %337 = vsyncpa [#allocation5], 1
    %s338 = scalar_lea.sflag [#allocation5], 1
    %339 = vsyncpa %s338, 1

</llo_original>
